<compile_context>
chip_gen: v5e
topology: v5e:2x2
jax: 0.10.0
libtpu: 0.0.40
codegen_flags: <defaults>
</compile_context>

<pallas_src>
import functools

import jax
import jax.numpy as jnp
from jax import lax
from jax.experimental import pallas as pl
from jax.experimental.pallas import tpu as pltpu


_ACTIVATIONS = {
    "Identity": lambda v: v,
    "ReLU": jax.nn.relu,
    "Tanh": jnp.tanh,
    "Sigmoid": jax.nn.sigmoid,
    # torch.nn.GELU defaults to the exact erf form (not the tanh approx).
    "GELU": functools.partial(jax.nn.gelu, approximate=False),
}
_TRANSCENDENTAL = ("Tanh", "Sigmoid", "GELU")

_LANE = 128


def _round_up(v, m):
    return ((v + m - 1) // m) * m


def _vmem_capacity_bytes():
    """Generation-aware VMEM capacity (64 MiB v7x, 128 MiB v5e/v6e)."""
    try:
        cap = getattr(pltpu.get_tpu_info(), "vmem_capacity_bytes", None)
        if cap:
            return int(cap)
    except Exception:
        pass
    return 64 * 2 ** 20  # conservative fallback (v7x per-core VMEM)


def _conv1d_kernel(*refs, k_taps, tile_l, c_in, activation, per_tap, pad_rows,
                   precision):
    # refs = xa[, xb], w, b, o[, win_scratch]
    #   xa : (1, C_in, TILE_L)        current tile of the padded input
    #   xb : (1, C_in, 128)           lane-aligned halo (first cols of next tile)
    #   w  : (C_out_blk, K*C_in_p)    im2col weight   (or (K, C_out_blk, C_in_p))
    #   b  : (C_out_blk, 1)           f32 bias
    #   o  : (1, C_out_blk, TILE_L)   lane-dense output tile
    i = 0
    xa_ref = refs[i]; i += 1
    xb_ref = None
    if k_taps > 1:
        xb_ref = refs[i]; i += 1
    w_ref, b_ref, o_ref = refs[i], refs[i + 1], refs[i + 2]
    win_ref = refs[i + 3] if pad_rows else None

    if pad_rows:
        # Zero-fill the padded sublane rows in VMEM instead of channel-padding
        # the input in HBM (the weight rows for those channels are zero, so
        # the matmul result is unchanged; input HBM traffic is not inflated).
        win_ref[:c_in, :tile_l] = xa_ref[0]
        if k_taps > 1:
            win_ref[:c_in, tile_l:] = xb_ref[0]
        win_ref[c_in:, :] = jnp.zeros(
            (win_ref.shape[0] - c_in, win_ref.shape[1]), win_ref.dtype)
        xt = win_ref[...]                          # (C_in_p, TILE_L [+128])
    else:
        if k_taps > 1:
            xt = jnp.concatenate([xa_ref[0], xb_ref[0]], axis=1)
        else:
            xt = xa_ref[0]

    if per_tap:
        # Large C_in: K accumulating MXU matmuls sharing one f32 accumulator
        # (avoids the (K*C_in_p, TILE_L) im2col temporary entirely).
        acc = jnp.dot(w_ref[0], xt[:, :tile_l],
                      preferred_element_type=jnp.float32, precision=precision)
        for kk in range(1, k_taps):
            acc = acc + jnp.dot(w_ref[kk], xt[:, kk:kk + tile_l],
                                preferred_element_type=jnp.float32,
                                precision=precision)
    else:
        # Small C_in: im2col columns + one MXU matmul (contraction = K*C_in_p).
        if k_taps == 1:
            cols = xt
        else:
            cols = jnp.concatenate(
                [xt[:, kk:kk + tile_l] for kk in range(k_taps)], axis=0)
        acc = jnp.dot(w_ref[...], cols,
                      preferred_element_type=jnp.float32, precision=precision)

    acc = acc + b_ref[...]                         # (C_out_blk, 1) broadcast
    o_ref[0] = _ACTIVATIONS[activation](acc).astype(o_ref.dtype)


def conv1d_block(x, weight, bias, activation="Identity"):
    """Pallas equivalent of torch Conv1dBlock.forward (Conv1d + activation)."""
    n, c_in, length = x.shape
    c_out, c_in_w, k = weight.shape
    assert c_in_w == c_in
    assert bias.shape == (c_out,)
    assert activation in _ACTIVATIONS
    assert k - 1 <= _LANE, "kernel_size > 129 not supported"
    pad = k // 2
    l_out = length + 2 * pad - k + 1

    itemsize = jnp.dtype(x.dtype).itemsize
    w_itemsize = jnp.dtype(weight.dtype).itemsize

    # Sublane granule; only the weight / in-kernel window use the padded
    # channel count — the input stays unpadded in HBM.
    granule = max(8, 32 // itemsize)
    c_in_p = _round_up(c_in, granule)
    pad_rows = c_in_p != c_in
    halo = _LANE if k > 1 else 0                 # lane-aligned halo (>= K-1)
    per_tap = (k > 1) and (c_in_p >= 256)

    # C_out tiling: keeps the resident weight block small for very large
    # out_channels; its block index stays constant across the L axis.
    if c_out >= 512 and c_out % 256 == 0:
        c_out_blk = 256
    elif c_out >= 256 and c_out % 128 == 0:
        c_out_blk = 128
    else:
        c_out_blk = c_out
    num_co = c_out // c_out_blk

    w_block_bytes = c_out_blk * k * c_in_p * w_itemsize
    # Weight/bias block index never changes along the L axis; single-buffer
    # large weight blocks so they are not double-buffered in VMEM.
    w_bufs = 1 if w_block_bytes > 4 * 2 ** 20 else 2

    vmem_cap = _vmem_capacity_bytes()

    def step_vmem(tl):
        b = 2 * c_in * tl * itemsize               # input tile (double buffered)
        b += 2 * c_in * halo * itemsize            # halo tile
        b += 2 * c_out_blk * tl * itemsize         # output tile
        b += w_bufs * w_block_bytes + 2 * c_out_blk * 4
        if pad_rows or k > 1:
            b += c_in_p * (tl + halo) * itemsize   # window scratch / concat temp
        if (not per_tap) and k > 1:
            b += k * c_in_p * tl * itemsize        # im2col cols temporary
        b += c_out_blk * tl * 4                    # f32 accumulator
        return b

    # Lane-dense length tile: largest 128-multiple whose working set
    # (including in-kernel temporaries) fits the per-generation VMEM budget.
    l_out_rounded = _round_up(l_out, _LANE)
    budget = int(0.7 * vmem_cap)
    tile_l = _LANE
    for cand in sorted({min(l_out_rounded, c)
                        for c in (2048, 1024, 512, 256, 128)}, reverse=True):
        if step_vmem(cand) <= budget:
            tile_l = cand
            break
    num_tiles = pl.cdiv(l_out_rounded, tile_l)
    l_out_padded = num_tiles * tile_l

    # --- glue: a single cheap length-only pad of the input (conv zero padding
    # + round-up so every tile and its halo block are in range).  No channel
    # padding, no pre-extracted windows, no per-tile Python slice loop.
    len_pad = l_out_padded + halo
    x_pad = jnp.pad(x, ((0, 0), (0, 0), (pad, len_pad - pad - length)))

    # Weight re-layout (zero rows for padded channels; negligible bytes).
    w_pad = weight if not pad_rows else jnp.pad(
        weight, ((0, 0), (0, c_in_p - c_in), (0, 0)))
    w_pipe = {"pipeline_mode": pl.Buffered(1)} if w_bufs == 1 else {}
    if per_tap:
        w_arr = jnp.transpose(w_pad, (2, 0, 1))              # (K, C_out, C_in_p)
        w_spec = pl.BlockSpec((k, c_out_blk, c_in_p),
                              lambda b, co, t: (0, co, 0), **w_pipe)
    else:
        # im2col weight: W2d[o, kk*C_in_p + c] = weight[o, c, kk]
        w_arr = jnp.transpose(w_pad, (0, 2, 1)).reshape(c_out, k * c_in_p)
        w_spec = pl.BlockSpec((c_out_blk, k * c_in_p),
                              lambda b, co, t: (co, 0), **w_pipe)
    bias2d = bias.reshape(c_out, 1).astype(jnp.float32)

    # Pin matmul numerics for f32 inputs; bf16/int inputs run natively.
    precision = lax.Precision.HIGHEST if x.dtype == jnp.float32 else None

    kernel = functools.partial(
        _conv1d_kernel, k_taps=k, tile_l=tile_l, c_in=c_in,
        activation=activation, per_tap=per_tap, pad_rows=pad_rows,
        precision=precision)

    in_specs = [pl.BlockSpec((1, c_in, tile_l), lambda b, co, t: (b, 0, t))]
    operands = [x_pad]
    if k > 1:
        ratio = tile_l // _LANE
        # Halo: the first 128 columns after the current tile, fetched as a
        # second auto-pipelined view of the SAME HBM array (no duplicated
        # windows array; only 128 extra columns read per tile, lane-aligned
        # so the DMA is unmasked).
        # TODO(synk): pl.Buffered(3) on these input specs for v7x
        # short-sequence latency hiding.
        in_specs.append(pl.BlockSpec(
            (1, c_in, _LANE),
            lambda b, co, t, _r=ratio: (b, 0, (t + 1) * _r)))
        operands.append(x_pad)
    in_specs += [w_spec, pl.BlockSpec((c_out_blk, 1), lambda b, co, t: (co, 0))]
    operands += [w_arr, bias2d]

    scratch_shapes = []
    if pad_rows:
        scratch_shapes.append(pltpu.VMEM((c_in_p, tile_l + halo), x.dtype))

    flops = 2 * n * c_out * c_in * k * l_out
    transcendentals = n * c_out * l_out if activation in _TRANSCENDENTAL else 0
    bytes_accessed = (n * c_in * (l_out_padded + halo * num_tiles) * itemsize
                      + n * num_co * w_block_bytes + c_out * 4
                      + n * c_out * l_out_padded * itemsize)
    vmem_limit = int(min(int(0.9 * vmem_cap),
                         max(16 * 2 ** 20, 2 * step_vmem(tile_l))))

    out_padded = pl.pallas_call(
        kernel,
        out_shape=jax.ShapeDtypeStruct((n, c_out, l_out_padded), x.dtype),
        grid_spec=pltpu.PrefetchScalarGridSpec(
            num_scalar_prefetch=0,
            grid=(n, num_co, num_tiles),
            in_specs=in_specs,
            out_specs=pl.BlockSpec((1, c_out_blk, tile_l),
                                   lambda b, co, t: (b, co, t)),
            scratch_shapes=scratch_shapes,
        ),
        compiler_params=pltpu.CompilerParams(
            dimension_semantics=("parallel", "parallel", "parallel"),
            vmem_limit_bytes=vmem_limit),
        cost_estimate=pl.CostEstimate(
            flops=flops, transcendentals=transcendentals,
            bytes_accessed=bytes_accessed),
    )(*operands)

    return out_padded[:, :, :l_out]


def _reference_conv1d(x, weight, bias, activation="Identity"):
    # Pure-JAX reference (lax conv) for correctness checking.
    pad = weight.shape[2] // 2
    out = lax.conv_general_dilated(
        x.astype(jnp.float32), weight.astype(jnp.float32),
        window_strides=(1,), padding=[(pad, pad)],
        dimension_numbers=("NCH", "OIH", "NCH"),
        precision=lax.Precision.HIGHEST)
    out = out + bias.reshape(1, -1, 1).astype(jnp.float32)
    return _ACTIVATIONS[activation](out).astype(x.dtype)


if __name__ == "__main__":
    # Small deterministic problem matching Conv1dBlock(4, 8, 3):
    # batch=2, in_channels=4, out_channels=8, kernel_size=3, length=16.
    batch, in_ch, out_ch, ksize, length = 2, 4, 8, 3, 16

    key = jax.random.PRNGKey(0)
    kx, kw, kb = jax.random.split(key, 3)
    x = jax.random.normal(kx, (batch, in_ch, length), dtype=jnp.float32)
    # Deterministic param init (uniform like torch's default fan-in bound).
    bound = 1.0 / (in_ch * ksize) ** 0.5
    weight = jax.random.uniform(kw, (out_ch, in_ch, ksize), jnp.float32,
                                -bound, bound)
    bias = jax.random.uniform(kb, (out_ch,), jnp.float32, -bound, bound)

    for act in ("Identity", "ReLU"):
        out = jax.block_until_ready(conv1d_block(x, weight, bias, activation=act))
        ref = _reference_conv1d(x, weight, bias, activation=act)
        assert out.shape == (batch, out_ch, length), out.shape
        assert jnp.allclose(out, ref, atol=1e-5, rtol=1e-5), f"mismatch ({act})"

    print("KERNEL_OK")
</pallas_src>

<mosaic_0001>
module attributes {stable_mosaic.version = 11 : i64} {
  func.func @_conv1d_kernel(%arg0: i32, %arg1: i32, %arg2: i32, %arg3: memref<1x4x128xf32, #tpu.memory_space<vmem>>, %arg4: memref<1x4x128xf32, #tpu.memory_space<vmem>>, %arg5: memref<8x24xf32, #tpu.memory_space<vmem>>, %arg6: memref<8x1xf32, #tpu.memory_space<vmem>>, %arg7: memref<1x8x128xf32, #tpu.memory_space<vmem>>, %arg8: memref<8x256xf32, #tpu.memory_space<vmem>>) attributes {dimension_semantics = [#tpu.dimension_semantics<parallel>, #tpu.dimension_semantics<parallel>, #tpu.dimension_semantics<parallel>], iteration_bounds = array<i64: 2, 1, 1>, scalar_prefetch = 0 : i64, scratch_operands = 1 : i64, tpu.core_type = #tpu.core_type<tc>, window_params = [{transform_indices = @transform_0, window_bounds = array<i64: 1, 4, 128>}, {transform_indices = @transform_1, window_bounds = array<i64: 1, 4, 128>}, {transform_indices = @transform_2, window_bounds = array<i64: 8, 24>}, {transform_indices = @transform_3, window_bounds = array<i64: 8, 1>}, {transform_indices = @transform_4, window_bounds = array<i64: 1, 8, 128>}]} {
    %c0 = arith.constant 0 : index
    %c0_0 = arith.constant 0 : index
    %c0_1 = arith.constant 0 : index
    %0 = vector.load %arg3[%c0, %c0_0, %c0_1] : memref<1x4x128xf32, #tpu.memory_space<vmem>>, vector<1x4x128xf32>
    %1 = vector.shape_cast %0 : vector<1x4x128xf32> to vector<4x128xf32>
    %c0_2 = arith.constant 0 : index
    %c0_3 = arith.constant 0 : index
    %2 = vector.load %arg8[%c0_2, %c0_3] : memref<8x256xf32, #tpu.memory_space<vmem>>, vector<4x128xf32>
    tpu.vector_store %arg8[%c0_2, %c0_3], %1 {strides = array<i32>} : memref<8x256xf32, #tpu.memory_space<vmem>>, vector<4x128xf32>,
    %c0_4 = arith.constant 0 : index
    %c0_5 = arith.constant 0 : index
    %c0_6 = arith.constant 0 : index
    %3 = vector.load %arg4[%c0_4, %c0_5, %c0_6] : memref<1x4x128xf32, #tpu.memory_space<vmem>>, vector<1x4x128xf32>
    %4 = vector.shape_cast %3 : vector<1x4x128xf32> to vector<4x128xf32>
    %c0_7 = arith.constant 0 : index
    %c128 = arith.constant 128 : index
    %5 = vector.load %arg8[%c0_7, %c128] : memref<8x256xf32, #tpu.memory_space<vmem>>, vector<4x128xf32>
    tpu.vector_store %arg8[%c0_7, %c128], %4 {strides = array<i32>} : memref<8x256xf32, #tpu.memory_space<vmem>>, vector<4x128xf32>,
    %cst = arith.constant 0.000000e+00 : f32
    %6 = vector.broadcast %cst : f32 to vector<4x256xf32>
    %c4 = arith.constant 4 : index
    %c0_8 = arith.constant 0 : index
    %7 = vector.load %arg8[%c4, %c0_8] : memref<8x256xf32, #tpu.memory_space<vmem>>, vector<4x256xf32>
    tpu.vector_store %arg8[%c4, %c0_8], %6 {strides = array<i32>} : memref<8x256xf32, #tpu.memory_space<vmem>>, vector<4x256xf32>,
    %c0_9 = arith.constant 0 : index
    %c0_10 = arith.constant 0 : index
    %8 = vector.load %arg8[%c0_9, %c0_10] : memref<8x256xf32, #tpu.memory_space<vmem>>, vector<8x256xf32>
    %9 = vector.extract_strided_slice %8 {offsets = [0, 0], sizes = [8, 128], strides = [1, 1]} : vector<8x256xf32> to vector<8x128xf32>
    %10 = vector.extract_strided_slice %8 {offsets = [0, 1], sizes = [8, 128], strides = [1, 1]} : vector<8x256xf32> to vector<8x128xf32>
    %11 = vector.extract_strided_slice %8 {offsets = [0, 2], sizes = [8, 128], strides = [1, 1]} : vector<8x256xf32> to vector<8x128xf32>
    %12 = tpu.concatenate %9, %10, %11 in 0 : vector<8x128xf32>, vector<8x128xf32>, vector<8x128xf32> -> vector<24x128xf32>
    %c0_11 = arith.constant 0 : index
    %c0_12 = arith.constant 0 : index
    %13 = vector.load %arg5[%c0_11, %c0_12] : memref<8x24xf32, #tpu.memory_space<vmem>>, vector<8x24xf32>
    %cst_13 = arith.constant dense<0.000000e+00> : vector<8x128xf32>
    %14 = tpu.matmul %13, %12, %cst_13 {dimension_numbers = #tpu.dot_dimension_numbers<[1], [0], [0], [1], [0, 0, 1, 1], [], []>, precision = #tpu.contract_precision<fp32>} : vector<8x24xf32>, vector<24x128xf32>, vector<8x128xf32> -> vector<8x128xf32>
    %c0_14 = arith.constant 0 : index
    %c0_15 = arith.constant 0 : index
    %15 = vector.load %arg6[%c0_14, %c0_15] : memref<8x1xf32, #tpu.memory_space<vmem>>, vector<8x1xf32>
    %16 = vector.broadcast %15 : vector<8x1xf32> to vector<8x128xf32>
    %17 = arith.addf %14, %16 : vector<8x128xf32>
    %c0_16 = arith.constant 0 : index
    %c0_17 = arith.constant 0 : index
    %c0_18 = arith.constant 0 : index
    %18 = vector.load %arg7[%c0_16, %c0_17, %c0_18] : memref<1x8x128xf32, #tpu.memory_space<vmem>>, vector<1x8x128xf32>
    %19 = vector.shape_cast %18 : vector<1x8x128xf32> to vector<8x128xf32>
    %20 = vector.shape_cast %17 : vector<8x128xf32> to vector<1x8x128xf32>
    tpu.vector_store %arg7[%c0_16, %c0_17, %c0_18], %20 {strides = array<i32>} : memref<1x8x128xf32, #tpu.memory_space<vmem>>, vector<1x8x128xf32>,
    return
  }
  func.func @transform_0(%arg0: i32, %arg1: i32, %arg2: i32) -> (i32, i32, i32) {
    %c0_i32 = arith.constant 0 : i32
    %c0_i32_0 = arith.constant 0 : i32
    return %arg0, %c0_i32, %arg2 : i32, i32, i32
  }
  func.func @transform_1(%arg0: i32, %arg1: i32, %arg2: i32) -> (i32, i32, i32) {
    %c1_i32 = arith.constant 1 : i32
    %0 = arith.addi %arg2, %c1_i32 : i32
    %c1_i32_0 = arith.constant 1 : i32
    %1 = arith.muli %0, %c1_i32_0 : i32
    %c0_i32 = arith.constant 0 : i32
    %c0_i32_1 = arith.constant 0 : i32
    return %arg0, %c0_i32, %1 : i32, i32, i32
  }
  func.func @transform_2(%arg0: i32, %arg1: i32, %arg2: i32) -> (i32, i32) {
    %c0_i32 = arith.constant 0 : i32
    %c0_i32_0 = arith.constant 0 : i32
    return %arg1, %c0_i32 : i32, i32
  }
  func.func @transform_3(%arg0: i32, %arg1: i32, %arg2: i32) -> (i32, i32) {
    %c0_i32 = arith.constant 0 : i32
    %c0_i32_0 = arith.constant 0 : i32
    return %arg1, %c0_i32 : i32, i32
  }
  func.func @transform_4(%arg0: i32, %arg1: i32, %arg2: i32) -> (i32, i32, i32) {
    %c0_i32 = arith.constant 0 : i32
    return %arg0, %arg1, %arg2 : i32, i32, i32
  }
}

</mosaic_0001>

<llo_original>
// kernel: tpu_custom_call.1
$region0: #{tpu_custom_call.1}
  #allocation0 [shape = 'u32[]', space=smem, size = 0x4, offset = 0x4, fixed_abs, tag = 'smem constant byte address 0x4 - core index']
  #allocation1 [shape = 'u32[72,128]{1,0:T(1,128)}', space=vmem, size = 0x9000, scoped, tag = 'internal scratch']
  #allocation2 [shape = 'f32[8,256]{1,0:T(8,128)}', space=vmem, size = 0x2000, scoped, tag = 'scratch operand']
  %s0 = inlined_call_operand.hbm [shape: f32[2,4,256], index: 0, kind: input, shape index: {}]
  %s1 = inlined_call_operand.hbm [shape: f32[2,4,256], index: 1, kind: input, shape index: {}]
  %s2 = inlined_call_operand.vmem [shape: f32[8,24], index: 2, kind: input, shape index: {}]
  %s3 = inlined_call_operand.vmem [shape: f32[8,1], index: 3, kind: input, shape index: {}]
  %s4 = inlined_call_operand.hbm [shape: f32[2,8,128], index: 4, kind: output, shape index: {}]
  %s5 = sld [smem:[#allocation0]]
  $region57: #{tpu_custom_call.1} parent=0
    _
  %s7 = ssub.s32 1, %s5
  %s8 = scalar_select 0, %s7, %s5
  $region1: #{tpu_custom_call.1} parent=0
    #allocation3 [shape = 'u8[4096]{0}', space=vmem, size = 0x1000, scoped, tag = 'input window, operand 0']
    #allocation4 [shape = 's32[2]{0}', space=sflag, size = 0x8, scoped, tag = 'scoped memory for tpu_custom_call.1']
    #allocation5 [shape = 's32[2]{0}', space=sflag, size = 0x8, scoped, tag = 'scoped memory for tpu_custom_call.1']
    #allocation6 [shape = 'u8[4096]{0}', space=vmem, size = 0x1000, scoped, tag = 'input window, operand 1']
    #allocation7 [shape = 's32[2]{0}', space=sflag, size = 0x8, scoped, tag = 'scoped memory for tpu_custom_call.1']
    #allocation8 [shape = 'u8[8192]{0}', space=vmem, size = 0x2000, scoped, tag = 'output window, operand 0']
    %9 = vsyncpa [#allocation4], 0
    %s10 = scalar_lea.sflag [#allocation4], 1
    %11 = vsyncpa %s10, 0
    %12 = vsyncpa [#allocation7], 0
    %s13 = scalar_lea.sflag [#allocation7], 1
    %14 = vsyncpa %s13, 0
    %15 = vsyncpa [#allocation5], 0
    %s16 = scalar_lea.sflag [#allocation5], 1
    %17 = vsyncpa %s16, 0
    loop: start=0, step=1, limit=4
    $region2: #{tpu_custom_call.1} parent=1 // loop_pre_header
      _
    $region3: #{tpu_custom_call.1} parent=1 // loop_header
      %s19 = sphi 0, %s23
      %p20 = scmp.ge.s32.totalorder %s19, 4
      %s26 = sphi 0, %s45
      %s27 = sphi 0, %s41
      %s28 = sphi 0, %s37
      %s29 = sphi 0, %s26
      %s30 = sphi 0, %s27
      %s31 = sphi 0, %s28
      %s32 = sphi 0, %s29
      %s33 = sphi 0, %s30
      %s34 = sphi 0, %s31
      %s50 = sphi 0, %s52
      %s53 = sphi 0, %s50
      %s54 = sphi 0, %s53
      %s70 = sphi 0, %s54
      %s80 = sphi 0, %s82
      %s83 = sphi 0, %s80
      %s84 = sphi 0, %s83
      %s100 = sphi 0, %s84
      %s106 = sphi 0, %s108
      %s109 = sphi 0, %s106
      %s110 = sphi 0, %s109
      %s126 = sphi 0, %s110
      %s132 = sphi 0, %s134
      %s135 = sphi 0, %s132
      %s136 = sphi 0, %s135
      %s152 = sphi 0, %s136
      %s162 = sphi 0, %s164
      %s165 = sphi 0, %s162
      %s166 = sphi 0, %s165
      %s182 = sphi 0, %s166
    $region4: #{tpu_custom_call.1} parent=1 // loop_header_branch
      %22 = sbr.rel (%p20) target = $region8
    $region5: #{tpu_custom_call.1} parent=1 // loop_body
      %s24 = ssub.s32 %s19, 1
      %s25 = ssub.s32 %s19, 2
      %s35 = sadd.s32 1, %s28
      %p36 = scmp.ge.s32.totalorder %s35, 1
      %s37 = scalar_select %p36, 0, %s35
      %s38 = sadd.s32 1, %s27
      %s39 = scalar_select %p36, %s38, %s27
      %p40 = scmp.ge.s32.totalorder %s39, 1
      %s41 = scalar_select %p40, 0, %s39
      %s42 = sadd.s32 1, %s26
      %s43 = scalar_select %p40, %s42, %s26
      %p44 = scmp.ge.s32.totalorder %s43, 2
      %s45 = scalar_select %p44, 0, %s43
      %s46 = ssub.s32 %s26, %s45
      %s47 = ssub.s32 %s28, %s37
      %s48 = sor.u32 %s46, %s47
      %p49 = scmp.eq.s32.totalorder %s48, 0
      %s51 = sadd.s32 %s50, 1
      %s52 = scalar_select %p49, %s50, %s51
      %p55 = pneg %p49
      %p56 = scmp.eq.s32.totalorder %s19, 1
      %p57 = por %p55, %p56
      %p58 = scmp.ne.s32.totalorder %s50, %s53
      %p59 = scmp.eq.s32.totalorder %s19, 0
      %p60 = por %p58, %p59
      %p61 = scmp.ne.s32.totalorder %s50, %s53
      %p62 = scmp.eq.s32.totalorder %s24, 1
      %p63 = por %p61, %p62
      %p64 = scmp.ne.s32.totalorder %s53, %s54
      %p65 = scmp.eq.s32.totalorder %s24, 0
      %p66 = por %p64, %p65
      %p67 = scmp.ne.s32.totalorder %s53, %s54
      %p68 = scmp.eq.s32.totalorder %s25, 1
      %p69 = por %p67, %p68
      %p71 = scmp.ne.s32.totalorder %s54, %s70
      %p72 = scmp.eq.s32.totalorder %s25, 0
      %p73 = por %p71, %p72
      %s74 = sadd.s32 %s28, 1
      %s75 = sadd.s32 %s37, 1
      %s76 = ssub.s32 %s26, %s45
      %s77 = ssub.s32 %s74, %s75
      %s78 = sor.u32 %s76, %s77
      %p79 = scmp.eq.s32.totalorder %s78, 0
      %s81 = sadd.s32 %s80, 1
      %s82 = scalar_select %p79, %s80, %s81
      %p85 = pneg %p79
      %p86 = scmp.eq.s32.totalorder %s19, 1
      %p87 = por %p85, %p86
      %p88 = scmp.ne.s32.totalorder %s80, %s83
      %p89 = scmp.eq.s32.totalorder %s19, 0
      %p90 = por %p88, %p89
      %p91 = scmp.ne.s32.totalorder %s80, %s83
      %p92 = scmp.eq.s32.totalorder %s24, 1
      %p93 = por %p91, %p92
      %p94 = scmp.ne.s32.totalorder %s83, %s84
      %p95 = scmp.eq.s32.totalorder %s24, 0
      %p96 = por %p94, %p95
      %p97 = scmp.ne.s32.totalorder %s83, %s84
      %p98 = scmp.eq.s32.totalorder %s25, 1
      %p99 = por %p97, %p98
      %p101 = scmp.ne.s32.totalorder %s84, %s100
      %p102 = scmp.eq.s32.totalorder %s25, 0
      %p103 = por %p101, %p102
      %s104 = ssub.s32 %s27, %s41
      %p105 = scmp.eq.s32.totalorder %s104, 0
      %s107 = sadd.s32 %s106, 1
      %s108 = scalar_select %p105, %s106, %s107
      %p111 = pneg %p105
      %p112 = scmp.eq.s32.totalorder %s19, 1
      %p113 = por %p111, %p112
      %p114 = scmp.ne.s32.totalorder %s106, %s109
      %p115 = scmp.eq.s32.totalorder %s19, 0
      %p116 = por %p114, %p115
      %p117 = scmp.ne.s32.totalorder %s106, %s109
      %p118 = scmp.eq.s32.totalorder %s24, 1
      %p119 = por %p117, %p118
      %p120 = scmp.ne.s32.totalorder %s109, %s110
      %p121 = scmp.eq.s32.totalorder %s24, 0
      %p122 = por %p120, %p121
      %p123 = scmp.ne.s32.totalorder %s109, %s110
      %p124 = scmp.eq.s32.totalorder %s25, 1
      %p125 = por %p123, %p124
      %p127 = scmp.ne.s32.totalorder %s110, %s126
      %p128 = scmp.eq.s32.totalorder %s25, 0
      %p129 = por %p127, %p128
      %s130 = ssub.s32 %s27, %s41
      %p131 = scmp.eq.s32.totalorder %s130, 0
      %s133 = sadd.s32 %s132, 1
      %s134 = scalar_select %p131, %s132, %s133
      %p137 = pneg %p131
      %p138 = scmp.eq.s32.totalorder %s19, 1
      %p139 = por %p137, %p138
      %p140 = scmp.ne.s32.totalorder %s132, %s135
      %p141 = scmp.eq.s32.totalorder %s19, 0
      %p142 = por %p140, %p141
      %p143 = scmp.ne.s32.totalorder %s132, %s135
      %p144 = scmp.eq.s32.totalorder %s24, 1
      %p145 = por %p143, %p144
      %p146 = scmp.ne.s32.totalorder %s135, %s136
      %p147 = scmp.eq.s32.totalorder %s24, 0
      %p148 = por %p146, %p147
      %p149 = scmp.ne.s32.totalorder %s135, %s136
      %p150 = scmp.eq.s32.totalorder %s25, 1
      %p151 = por %p149, %p150
      %p153 = scmp.ne.s32.totalorder %s136, %s152
      %p154 = scmp.eq.s32.totalorder %s25, 0
      %p155 = por %p153, %p154
      %s156 = ssub.s32 %s26, %s45
      %s157 = ssub.s32 %s27, %s41
      %s158 = sor.u32 %s156, %s157
      %s159 = ssub.s32 %s28, %s37
      %s160 = sor.u32 %s158, %s159
      %p161 = scmp.eq.s32.totalorder %s160, 0
      %s163 = sadd.s32 %s162, 1
      %s164 = scalar_select %p161, %s162, %s163
      %p167 = pneg %p161
      %p168 = scmp.eq.s32.totalorder %s19, 1
      %p169 = por %p167, %p168
      %p170 = scmp.ne.s32.totalorder %s162, %s165
      %p171 = scmp.eq.s32.totalorder %s19, 0
      %p172 = por %p170, %p171
      %p173 = scmp.ne.s32.totalorder %s162, %s165
      %p174 = scmp.eq.s32.totalorder %s24, 1
      %p175 = por %p173, %p174
      %p176 = scmp.ne.s32.totalorder %s165, %s166
      %p177 = scmp.eq.s32.totalorder %s24, 0
      %p178 = por %p176, %p177
      %p179 = scmp.ne.s32.totalorder %s165, %s166
      %p180 = scmp.eq.s32.totalorder %s25, 1
      %p181 = por %p179, %p180
      %p183 = scmp.ne.s32.totalorder %s166, %s182
      %p184 = scmp.eq.s32.totalorder %s25, 0
      %p185 = por %p183, %p184
      %p186 = scmp.le.s32.totalorder 1, %s19
      %p187 = scmp.lt.s32.totalorder %s19, 3
      %p188 = pnand %p186, %p187
      %p189 = pneg %p188
      // Predicated region
      $region9: #{tpu_custom_call.1} parent=5 // pred_check
        _
      $region10: #{tpu_custom_call.1} parent=5 // pred_check_branch
        %191 = sbr.rel (%p188) target = $region12
      $region11: #{tpu_custom_call.1} parent=5 // pred_region
        %s192 = ssub.s32 %s19, 1
        // Predicated region
        $region13: #{tpu_custom_call.1} parent=11 // pred_check
          %p193 = pneg %p122
        $region14: #{tpu_custom_call.1} parent=11 // pred_check_branch
          %195 = sbr.rel (%p193) target = $region16
        $region15: #{tpu_custom_call.1} parent=11 // pred_region
          %p196 = scmp.lt.s32.totalorder %s30, 0
          %s197 = scalar_select %p196, %s30, 0
          %s198 = smul.addr %s197, 8
          %s199 = scalar_lea.vmem %s2, %s198
        $region16: #{tpu_custom_call.1} parent=11 // pred_fallthru
          _
        // Predicated region
        $region17: #{tpu_custom_call.1} parent=11 // pred_check
          %p200 = pneg %p148
        $region18: #{tpu_custom_call.1} parent=11 // pred_check_branch
          %202 = sbr.rel (%p200) target = $region20
        $region19: #{tpu_custom_call.1} parent=11 // pred_region
          %p203 = scmp.lt.s32.totalorder %s30, 0
          %s204 = scalar_select %p203, %s30, 0
          %s205 = smul.addr %s204, 8
          %s206 = scalar_lea.vmem %s3, %s205
        $region20: #{tpu_custom_call.1} parent=11 // pred_fallthru
          _
      $region12: #{tpu_custom_call.1} parent=5 // pred_fallthru
        _
      %p207 = scmp.lt.s32.totalorder %s19, 2
      // Predicated region
      $region21: #{tpu_custom_call.1} parent=5 // pred_check
        %p208 = pneg %p207
      $region22: #{tpu_custom_call.1} parent=5 // pred_check_branch
        %210 = sbr.rel (%p208) target = $region24
      $region23: #{tpu_custom_call.1} parent=5 // pred_region
        // Predicated region
        $region25: #{tpu_custom_call.1} parent=23 // pred_check
          %p211 = pneg %p60
        $region26: #{tpu_custom_call.1} parent=23 // pred_check_branch
          %213 = sbr.rel (%p211) target = $region28
        $region27: #{tpu_custom_call.1} parent=23 // pred_region
          %s214 = sand.u32 %s50, 1
          %s215 = scalar_lea.sflag [#allocation4], %s214
          %s216 = sand.u32 %s50, 1
          %s217 = smul.addr %s216, 4
          %s218 = scalar_lea.vmem [#allocation3], %s217
          %220 = vsyncadd %s215, 0
          %s221 = smul.addr %s26, 2
          %s222 = sadd.s32 %s28, %s221
          %s223 = smul.addr %s222, 4
          %s224 = scalar_lea.hbm %s0, %s223
          %s226 = sshll.u32 %s224, 4
          %s227 = int_to_ptr.hbm [resolvable:$true] %s226
          %s228 = sshll.u32 %s218, 4
          %s229 = int_to_ptr.vmem [resolvable:$true] %s228
          %231 = dma.hbm_to_vmem [thread:$0]  %s227, 64, %s229, %s215
        $region28: #{tpu_custom_call.1} parent=23 // pred_fallthru
          _
        // Predicated region
        $region29: #{tpu_custom_call.1} parent=23 // pred_check
          %p232 = pneg %p90
        $region30: #{tpu_custom_call.1} parent=23 // pred_check_branch
          %234 = sbr.rel (%p232) target = $region32
        $region31: #{tpu_custom_call.1} parent=23 // pred_region
          %s235 = sand.u32 %s80, 1
          %s236 = scalar_lea.sflag [#allocation7], %s235
          %s237 = sand.u32 %s80, 1
          %s238 = smul.addr %s237, 4
          %s239 = scalar_lea.vmem [#allocation6], %s238
          %s240 = sadd.s32 %s28, 1
          %242 = vsyncadd %s236, 0
          %s243 = smul.addr %s26, 2
          %s244 = sadd.s32 %s240, %s243
          %s245 = smul.addr %s244, 4
          %s246 = scalar_lea.hbm %s1, %s245
          %s248 = sshll.u32 %s246, 4
          %s249 = int_to_ptr.hbm [resolvable:$true] %s248
          %s250 = sshll.u32 %s239, 4
          %s251 = int_to_ptr.vmem [resolvable:$true] %s250
          %253 = dma.hbm_to_vmem [thread:$0]  %s249, 64, %s251, %s236
        $region32: #{tpu_custom_call.1} parent=23 // pred_fallthru
          _
      $region24: #{tpu_custom_call.1} parent=5 // pred_fallthru
        _
      %p254 = scmp.le.s32.totalorder 1, %s19
      %p255 = scmp.lt.s32.totalorder %s19, 3
      %p256 = pnand %p254, %p255
      %p257 = pneg %p256
      // Predicated region
      $region33: #{tpu_custom_call.1} parent=5 // pred_check
        _
      $region34: #{tpu_custom_call.1} parent=5 // pred_check_branch
        %259 = sbr.rel (%p256) target = $region36
      $region35: #{tpu_custom_call.1} parent=5 // pred_region
        %s260 = ssub.s32 %s19, 1
        %s261 = sand.u32 %s53, 1
        %s262 = scalar_lea.sflag [#allocation4], %s261
        %s263 = sand.u32 %s53, 1
        %s264 = smul.addr %s263, 4
        %s265 = scalar_lea.vmem [#allocation3], %s264
        // Predicated region
        $region37: #{tpu_custom_call.1} parent=35 // pred_check
          %p266 = pneg %p66
        $region38: #{tpu_custom_call.1} parent=35 // pred_check_branch
          %268 = sbr.rel (%p266) target = $region40
        $region39: #{tpu_custom_call.1} parent=35 // pred_region
          %270 = dma.done %s262, 64
        $region40: #{tpu_custom_call.1} parent=35 // pred_fallthru
          _
        %s271 = sand.u32 %s83, 1
        %s272 = scalar_lea.sflag [#allocation7], %s271
        %s273 = sand.u32 %s83, 1
        %s274 = smul.addr %s273, 4
        %s275 = scalar_lea.vmem [#allocation6], %s274
        // Predicated region
        $region41: #{tpu_custom_call.1} parent=35 // pred_check
          %p276 = pneg %p96
        $region42: #{tpu_custom_call.1} parent=35 // pred_check_branch
          %278 = sbr.rel (%p276) target = $region44
        $region43: #{tpu_custom_call.1} parent=35 // pred_region
          %280 = dma.done %s272, 64
        $region44: #{tpu_custom_call.1} parent=35 // pred_fallthru
          _
        %s281 = sand.u32 %s53, 1
        %s282 = scalar_lea.sflag [#allocation4], %s281
        %s283 = sand.u32 %s53, 1
        %s284 = smul.addr %s283, 4
        %s285 = scalar_lea.vmem [#allocation3], %s284
        %p286 = pneg %p66
        %p287 = pneg %p63
        %s288 = sand.u32 %s83, 1
        %s289 = scalar_lea.sflag [#allocation7], %s288
        %s290 = sand.u32 %s83, 1
        %s291 = smul.addr %s290, 4
        %s292 = scalar_lea.vmem [#allocation6], %s291
        %p293 = pneg %p96
        %p294 = pneg %p93
        %p295 = scmp.lt.s32.totalorder %s30, 0
        %s296 = scalar_select %p295, %s30, 0
        %s297 = smul.addr %s296, 8
        %s298 = scalar_lea.vmem %s2, %s297
        %p299 = pneg %p122
        %p300 = pneg %p119
        %p301 = scmp.lt.s32.totalorder %s30, 0
        %s302 = scalar_select %p301, %s30, 0
        %s303 = smul.addr %s302, 8
        %s304 = scalar_lea.vmem %s3, %s303
        %p305 = pneg %p148
        %p306 = pneg %p145
        %p307 = pneg %p178
        %p308 = pneg %p175
        %s309 = sand.u32 %s165, 1
        %s310 = scalar_lea.sflag [#allocation5], %s309
        %s311 = sand.u32 %s165, 1
        %s312 = smul.addr %s311, 8
        %s313 = scalar_lea.vmem [#allocation8], %s312
        %s314 = sadd.s32 %s31, 1
        %p315 = scmp.lt.s32.totalorder %s30, 0
        %s316 = scalar_select %p315, %s30, 0
        %s317 = smul.addr %s316, 8
        %s318 = scalar_lea.vmem %s2, %s317
        %p319 = scmp.lt.s32.totalorder %s30, 0
        %s320 = scalar_select %p319, %s30, 0
        %s321 = smul.addr %s320, 8
        %s322 = scalar_lea.vmem %s3, %s321
        %v323 = vld [vmem:[%s265] sm:$0xf]
        %324 = vst [vmem:[#allocation2] sm:$0xf] %v323
        %v325 = vld [vmem:[%s275] sm:$0xf]
        %326 = vst [vmem:[#allocation2 + $0x8] sm:$0xf] %v325
        %327 = vst [vmem:[#allocation2] sm:$0xf0] 0.0
        %328 = vst [vmem:[#allocation2 + $0x8] sm:$0xf0] 0.0
        %v329 = vld [vmem:[#allocation2] sm:$0xff]
        %v330 = vld [vmem:[#allocation2 + $0x8] sm:$0xff]
        %333 = vrot.lane.b32.xlu0 %v329, 127
        %v334 = vpop.permute.xlu0 %333
        %335 = vrot.lane.b32.xlu0 %v330, 127
        %v336 = vpop.permute.xlu0 %335
        %vm337 = vcmask 1039360
        %v338 = vsel %vm337, %v334, %v336
        %340 = vrot.lane.b32.xlu0 %v329, 126
        %v341 = vpop.permute.xlu0 %340
        %342 = vrot.lane.b32.xlu0 %v330, 126
        %v343 = vpop.permute.xlu0 %342
        %vm344 = vcmask 1031168
        %v345 = vsel %vm344, %v341, %v343
        %v347 = vld [vmem:[%s318] sm:$0xff]
        %v348 = vld [vmem:[%s322] sm:$0xff]
        %350 = vset.pattern.permute.xlu0 0
        %351 = vperm.xlu0 %350, %v348
        %v352 = vpop.permute.xlu0 %351
        %vm354 = vcmask 195584
        %v356 = vsel %vm354, %v347, 0
        %358 = vmatpush.msra.mxu0 0.0
        %359 = vmatpush.msra.mxu0 0.0
        %360 = vmatpush.msra.mxu0 0.0
        %361 = vmatpush.msra.mxu0 0.0
        %362 = vmatpush.msra.mxu0 0.0
        %363 = vmatpush.msra.mxu0 0.0
        %364 = vmatpush.msra.mxu0 0.0
        %365 = vmatpush.msra.mxu0 0.0
        %366 = vmatpush.msra.mxu0 0.0
        %367 = vmatpush.msra.mxu0 0.0
        %368 = vmatpush.msra.mxu0 0.0
        %369 = vmatpush.msra.mxu0 0.0
        %370 = vmatpush.msra.mxu0 0.0
        %v371 = vand.u32 %v345, 4294901760
        %372 = vmatpush.msra.mxu0 %v371
        %v373 = vand.u32 %v338, 4294901760
        %374 = vmatpush.msra.mxu0 %v373
        %v375 = vand.u32 %v329, 4294901760
        %376 = vmatpush.msra.mxu0 %v375
        %v377 = vand.u32 %v356, 4294901760
        %v378 = vsub.f32 %v356, %v377
        %v379 = vand.u32 %v378, 4294901760
        %v380 = vsub.f32 %v378, %v379
        %v381 = vand.u32 %v380, 4294901760
        %382 = vmatmul.f32.gmra.mxu0 %v381
        %v383 = vpop.f32.mrf.mxu0
        %v384 = vadd.f32 %v352, %v383
        %385 = vdwg.mxu0
        %386 = vmatpush.msra.mxu0 0.0
        %387 = vmatpush.msra.mxu0 0.0
        %388 = vmatpush.msra.mxu0 0.0
        %389 = vmatpush.msra.mxu0 0.0
        %390 = vmatpush.msra.mxu0 0.0
        %391 = vmatpush.msra.mxu0 0.0
        %392 = vmatpush.msra.mxu0 0.0
        %393 = vmatpush.msra.mxu0 0.0
        %394 = vmatpush.msra.mxu0 0.0
        %395 = vmatpush.msra.mxu0 0.0
        %396 = vmatpush.msra.mxu0 0.0
        %397 = vmatpush.msra.mxu0 0.0
        %398 = vmatpush.msra.mxu0 0.0
        %v399 = vand.u32 %v345, 4294901760
        %v400 = vsub.f32 %v345, %v399
        %v401 = vand.u32 %v400, 4294901760
        %v402 = vsub.f32 %v400, %v401
        %v403 = vand.u32 %v402, 4294901760
        %404 = vmatpush.msra.mxu0 %v403
        %v405 = vand.u32 %v338, 4294901760
        %v406 = vsub.f32 %v338, %v405
        %v407 = vand.u32 %v406, 4294901760
        %v408 = vsub.f32 %v406, %v407
        %v409 = vand.u32 %v408, 4294901760
        %410 = vmatpush.msra.mxu0 %v409
        %v411 = vand.u32 %v329, 4294901760
        %v412 = vsub.f32 %v329, %v411
        %v413 = vand.u32 %v412, 4294901760
        %v414 = vsub.f32 %v412, %v413
        %v415 = vand.u32 %v414, 4294901760
        %416 = vmatpush.msra.mxu0 %v415
        %v417 = vand.u32 %v356, 4294901760
        %418 = vmatmul.f32.gmra.mxu0 %v417
        %v419 = vpop.f32.mrf.mxu0
        %v420 = vadd.f32 %v384, %v419
        %421 = vdwg.mxu0
        %422 = vmatpush.msra.mxu0 0.0
        %423 = vmatpush.msra.mxu0 0.0
        %424 = vmatpush.msra.mxu0 0.0
        %425 = vmatpush.msra.mxu0 0.0
        %426 = vmatpush.msra.mxu0 0.0
        %427 = vmatpush.msra.mxu0 0.0
        %428 = vmatpush.msra.mxu0 0.0
        %429 = vmatpush.msra.mxu0 0.0
        %430 = vmatpush.msra.mxu0 0.0
        %431 = vmatpush.msra.mxu0 0.0
        %432 = vmatpush.msra.mxu0 0.0
        %433 = vmatpush.msra.mxu0 0.0
        %434 = vmatpush.msra.mxu0 0.0
        %v435 = vand.u32 %v345, 4294901760
        %v436 = vsub.f32 %v345, %v435
        %437 = vmatpush.msra.mxu0 %v436
        %v438 = vand.u32 %v338, 4294901760
        %v439 = vsub.f32 %v338, %v438
        %440 = vmatpush.msra.mxu0 %v439
        %v441 = vand.u32 %v329, 4294901760
        %v442 = vsub.f32 %v329, %v441
        %443 = vmatpush.msra.mxu0 %v442
        %v444 = vand.u32 %v356, 4294901760
        %v445 = vsub.f32 %v356, %v444
        %446 = vmatmul.f32.gmra.mxu0 %v445
        %v447 = vpop.f32.mrf.mxu0
        %v448 = vadd.f32 %v420, %v447
        %449 = vdwg.mxu0
        %450 = vmatpush.msra.mxu0 0.0
        %451 = vmatpush.msra.mxu0 0.0
        %452 = vmatpush.msra.mxu0 0.0
        %453 = vmatpush.msra.mxu0 0.0
        %454 = vmatpush.msra.mxu0 0.0
        %455 = vmatpush.msra.mxu0 0.0
        %456 = vmatpush.msra.mxu0 0.0
        %457 = vmatpush.msra.mxu0 0.0
        %458 = vmatpush.msra.mxu0 0.0
        %459 = vmatpush.msra.mxu0 0.0
        %460 = vmatpush.msra.mxu0 0.0
        %461 = vmatpush.msra.mxu0 0.0
        %462 = vmatpush.msra.mxu0 0.0
        %v463 = vand.u32 %v345, 4294901760
        %464 = vmatpush.msra.mxu0 %v463
        %v465 = vand.u32 %v338, 4294901760
        %466 = vmatpush.msra.mxu0 %v465
        %v467 = vand.u32 %v329, 4294901760
        %468 = vmatpush.msra.mxu0 %v467
        %v469 = vand.u32 %v356, 4294901760
        %v470 = vsub.f32 %v356, %v469
        %v471 = vand.u32 %v470, 4294901760
        %472 = vmatmul.f32.gmra.mxu0 %v471
        %v473 = vpop.f32.mrf.mxu0
        %v474 = vadd.f32 %v448, %v473
        %475 = vdwg.mxu0
        %476 = vmatpush.msra.mxu0 0.0
        %477 = vmatpush.msra.mxu0 0.0
        %478 = vmatpush.msra.mxu0 0.0
        %479 = vmatpush.msra.mxu0 0.0
        %480 = vmatpush.msra.mxu0 0.0
        %481 = vmatpush.msra.mxu0 0.0
        %482 = vmatpush.msra.mxu0 0.0
        %483 = vmatpush.msra.mxu0 0.0
        %484 = vmatpush.msra.mxu0 0.0
        %485 = vmatpush.msra.mxu0 0.0
        %486 = vmatpush.msra.mxu0 0.0
        %487 = vmatpush.msra.mxu0 0.0
        %488 = vmatpush.msra.mxu0 0.0
        %v489 = vand.u32 %v345, 4294901760
        %v490 = vsub.f32 %v345, %v489
        %v491 = vand.u32 %v490, 4294901760
        %492 = vmatpush.msra.mxu0 %v491
        %v493 = vand.u32 %v338, 4294901760
        %v494 = vsub.f32 %v338, %v493
        %v495 = vand.u32 %v494, 4294901760
        %496 = vmatpush.msra.mxu0 %v495
        %v497 = vand.u32 %v329, 4294901760
        %v498 = vsub.f32 %v329, %v497
        %v499 = vand.u32 %v498, 4294901760
        %500 = vmatpush.msra.mxu0 %v499
        %v501 = vand.u32 %v356, 4294901760
        %502 = vmatmul.f32.gmra.mxu0 %v501
        %v503 = vpop.f32.mrf.mxu0
        %v504 = vadd.f32 %v474, %v503
        %505 = vdwg.mxu0
        %506 = vmatpush.msra.mxu0 0.0
        %507 = vmatpush.msra.mxu0 0.0
        %508 = vmatpush.msra.mxu0 0.0
        %509 = vmatpush.msra.mxu0 0.0
        %510 = vmatpush.msra.mxu0 0.0
        %511 = vmatpush.msra.mxu0 0.0
        %512 = vmatpush.msra.mxu0 0.0
        %513 = vmatpush.msra.mxu0 0.0
        %514 = vmatpush.msra.mxu0 0.0
        %515 = vmatpush.msra.mxu0 0.0
        %516 = vmatpush.msra.mxu0 0.0
        %517 = vmatpush.msra.mxu0 0.0
        %518 = vmatpush.msra.mxu0 0.0
        %v519 = vand.u32 %v345, 4294901760
        %520 = vmatpush.msra.mxu0 %v519
        %v521 = vand.u32 %v338, 4294901760
        %522 = vmatpush.msra.mxu0 %v521
        %v523 = vand.u32 %v329, 4294901760
        %524 = vmatpush.msra.mxu0 %v523
        %v525 = vand.u32 %v356, 4294901760
        %526 = vmatmul.f32.gmra.mxu0 %v525
        %v527 = vpop.f32.mrf.mxu0
        %v528 = vadd.f32 %v504, %v527
        %529 = vdwg.mxu0
        %530 = vst [vmem:[%s313] sm:$0xff] %v528
        %s531 = sand.u32 %s165, 1
        %s532 = scalar_lea.sflag [#allocation5], %s531
        %s533 = sand.u32 %s165, 1
        %s534 = smul.addr %s533, 8
        %s535 = scalar_lea.vmem [#allocation8], %s534
        // Predicated region
        $region45: #{tpu_custom_call.1} parent=35 // pred_check
          %p536 = pneg %p175
        $region46: #{tpu_custom_call.1} parent=35 // pred_check_branch
          %538 = sbr.rel (%p536) target = $region48
        $region47: #{tpu_custom_call.1} parent=35 // pred_region
          %540 = vsyncadd %s532, 0
          %s541 = sadd.s32 %s31, %s30
          %s542 = sadd.s32 %s541, %s29
          %s543 = smul.addr %s542, 8
          %s544 = scalar_lea.hbm %s4, %s543
          %s546 = sshll.u32 %s535, 4
          %s547 = int_to_ptr.vmem [resolvable:$true] %s546
          %s548 = sshll.u32 %s544, 4
          %s549 = int_to_ptr.hbm [resolvable:$true] %s548
          %551 = dma.vmem_to_hbm [thread:$0]  %s547, 128, %s549, %s532
        $region48: #{tpu_custom_call.1} parent=35 // pred_fallthru
          _
      $region36: #{tpu_custom_call.1} parent=5 // pred_fallthru
        _
      %p552 = scmp.le.s32.totalorder 2, %s19
      // Predicated region
      $region49: #{tpu_custom_call.1} parent=5 // pred_check
        %p553 = pneg %p552
      $region50: #{tpu_custom_call.1} parent=5 // pred_check_branch
        %555 = sbr.rel (%p553) target = $region52
      $region51: #{tpu_custom_call.1} parent=5 // pred_region
        %s556 = ssub.s32 %s19, 2
        // Predicated region
        $region53: #{tpu_custom_call.1} parent=51 // pred_check
          %p557 = pneg %p181
        $region54: #{tpu_custom_call.1} parent=51 // pred_check_branch
          %559 = sbr.rel (%p557) target = $region56
        $region55: #{tpu_custom_call.1} parent=51 // pred_region
          %s560 = sand.u32 %s166, 1
          %s561 = scalar_lea.sflag [#allocation5], %s560
          %s562 = sand.u32 %s166, 1
          %s563 = smul.addr %s562, 8
          %s564 = scalar_lea.vmem [#allocation8], %s563
          %566 = dma.done %s561, 128
        $region56: #{tpu_custom_call.1} parent=51 // pred_fallthru
          _
      $region52: #{tpu_custom_call.1} parent=5 // pred_fallthru
        _
    $region6: #{tpu_custom_call.1} parent=1 // loop_footer
      %s23 = sadd.s32 1, %s19
    $region7: #{tpu_custom_call.1} parent=1 // loop_footer_branch
      %18 = sbr.rel target = $region3
    $region8: #{tpu_custom_call.1} parent=1 // loop_exit
      _
    %567 = vsyncpa [#allocation4], 1
    %s568 = scalar_lea.sflag [#allocation4], 1
    %569 = vsyncpa %s568, 1
    %570 = vsyncpa [#allocation7], 1
    %s571 = scalar_lea.sflag [#allocation7], 1
    %572 = vsyncpa %s571, 1
    %573 = vsyncpa [#allocation5], 1
    %s574 = scalar_lea.sflag [#allocation5], 1
    %575 = vsyncpa %s574, 1

</llo_original>
